<compile_context>
chip_gen: v5e
topology: v5e:2x2
jax: 0.10.0
libtpu: 0.0.40
codegen_flags: <defaults>
</compile_context>

<pallas_src>
import jax
import jax.numpy as jnp
from jax.experimental import pallas as pl
from jax.experimental.pallas import tpu as pltpu


def encoder_cls_kernel(gid_ref, lens_ref, emb_ref, wq_ref, wk_ref, wv_ref,
                       wo_ref, w1_ref, w2_ref, sp_ref, out_ref):
    R = gid_ref.shape[0]          # 2B * S  (all claim+context tokens, collapsed)
    TB = lens_ref.shape[0]        # 2B sequences
    S = R // TB                   # tokens per sequence
    VP, H = emb_ref.shape         # lane-padded embedding table (tok rows + pos rows)
    F = w1_ref.shape[1]

    tok_id = gid_ref[:, 0:1]      # (R, 1) i32 token-embedding row index
    pos_id = gid_ref[:, 1:2]      # (R, 1) i32 position-embedding row index
    lens = lens_ref[...]          # (TB, 1) i32 valid length per sequence

    # ---- fused token+position embedding lookup: one one-hot MXU matmul ----
    col_v = jax.lax.broadcasted_iota(jnp.int32, (R, VP), 1)
    onehot = jnp.where(jnp.logical_or(col_v == tok_id, col_v == pos_id), 1.0, 0.0)
    x2d = jnp.dot(onehot, emb_ref[...],
                  preferred_element_type=jnp.float32)          # (R, H) = tok + pos

    # ---- CLS-row selector as a tiny matmul (rows b*S); avoids strided
    #      sublane extraction / in-kernel value reshapes ----
    kcol = jax.lax.broadcasted_iota(jnp.int32, (TB, R), 1)     # key flat index
    qrow = jax.lax.broadcasted_iota(jnp.int32, (TB, R), 0)     # sequence index
    seq_start = qrow * S                                       # first row of each seq
    sel_cls = jnp.where(kcol == seq_start, 1.0, 0.0)           # (TB, R)
    x_cls = jnp.dot(sel_cls, x2d, preferred_element_type=jnp.float32)   # (TB, H)

    # packed small params (f32): rows 0..9 = bq bk bv bo b1 b2 g1 be1 g2 be2
    bq  = sp_ref[0:1, 0:H]
    bk  = sp_ref[1:2, 0:H]
    bv  = sp_ref[2:3, 0:H]
    bo  = sp_ref[3:4, 0:H]
    b1  = sp_ref[4:5, 0:F]
    b2  = sp_ref[5:6, 0:H]
    g1  = sp_ref[6:7, 0:H]
    be1 = sp_ref[7:8, 0:H]
    g2  = sp_ref[8:9, 0:H]
    be2 = sp_ref[9:10, 0:H]

    def mm(a, w_ref):             # bf16 MXU inputs, f32 accumulation
        return jnp.dot(a.astype(w_ref.dtype), w_ref[...],
                       preferred_element_type=jnp.float32)

    # K/V for every token; Q only for the CLS rows (everything downstream is
    # CLS-only, since only last_hidden_state[:, 0, :] is consumed).
    k2d = mm(x2d, wk_ref) + bk            # (R, H)
    v2d = mm(x2d, wv_ref) + bv            # (R, H)
    q_cls = mm(x_cls, wq_ref) + bq        # (TB, H); 1/sqrt(H) folded into wq/bq

    # ---- attention: single collapsed (TB, R) score matmul; block-diagonal +
    #      padding mask built in-kernel from lengths (no div/rem needed) ----
    scores = jax.lax.dot_general(
        q_cls.astype(jnp.bfloat16), k2d.astype(jnp.bfloat16),
        dimension_numbers=(((1,), (1,)), ((), ())),
        preferred_element_type=jnp.float32)                    # (TB, R)
    valid = jnp.logical_and(kcol >= seq_start, kcol < seq_start + lens)
    scores = jnp.where(valid, scores, jnp.float32(-1e30))

    scores = scores - jnp.max(scores, axis=-1, keepdims=True)  # kept for safety
    p = jnp.exp(scores)
    p = p * pl.reciprocal(jnp.sum(p, axis=-1, keepdims=True), approx=True)

    attn = jnp.dot(p.astype(jnp.bfloat16), v2d.astype(jnp.bfloat16),
                   preferred_element_type=jnp.float32)         # (TB, H)
    o = mm(attn, wo_ref) + bo                                  # (TB, H)

    def layernorm(vv, g, b):      # f32 VPU/EUP math
        mu = jnp.mean(vv, axis=-1, keepdims=True)
        d = vv - mu
        var = jnp.mean(d * d, axis=-1, keepdims=True)
        return d * jax.lax.rsqrt(var + 1e-12) * g + b

    h = layernorm(x_cls + o, g1, be1)                          # (TB, H)
    # tanh-approx GELU (guaranteed EUP lowering); HF default is exact erf GELU.
    ff = jax.nn.gelu(mm(h, w1_ref) + b1, approximate=True)     # (TB, F)
    ff = mm(ff, w2_ref) + b2                                   # (TB, H)
    out_ref[...] = layernorm(h + ff, g2, be2).astype(out_ref.dtype)


def encoder_cls_forward(gather_ids, lens_col, params):
    """gather_ids: (2B*S, 2) i32 [token row, position row]; lens_col: (2B, 1) i32.
       Returns CLS hidden states, shape (2B, H) f32."""
    R = gather_ids.shape[0]
    TB = lens_col.shape[0]
    emb = params["emb"]
    VP, H = emb.shape
    F = params["w1"].shape[1]

    def full(shape):
        return pl.BlockSpec(shape, lambda i: (0,) * len(shape))

    in_specs = [
        full((R, 2)),                 # gather ids (token + position rows)
        full((TB, 1)),                # sequence lengths
        full((VP, H)),                # combined tok+pos embedding table (f32)
        full((H, H)), full((H, H)), full((H, H)), full((H, H)),   # wq wk wv wo (bf16)
        full((H, F)), full((F, H)),   # FFN weights (bf16)
        full(params["smalls"].shape), # packed biases / LN params (f32)
    ]
    return pl.pallas_call(
        encoder_cls_kernel,
        out_shape=jax.ShapeDtypeStruct((TB, H), jnp.float32),
        grid=(1,),                    # single step: claim+context fused in one block
        in_specs=in_specs,
        out_specs=full((TB, H)),
        compiler_params=pltpu.CompilerParams(dimension_semantics=("arbitrary",)),
    )(gather_ids, lens_col, emb,
      params["wq"], params["wk"], params["wv"], params["wo"],
      params["w1"], params["w2"], params["smalls"])


def text_embedding_forward(claim_ids, claim_mask, ctx_ids, ctx_mask, params):
    """Mirrors TextEmbedding.forward (embedding_type != 1 branch):
       CLS pooling of claim & context encodings, then concat along dim=1."""
    B, S = claim_ids.shape
    VP = params["emb"].shape[0]
    POS_OFF = VP - S                  # position rows live at the table tail

    # Fuse claim + context into ONE encoder dispatch (batch axis -> 2B).  Only
    # tiny i32 id / length arrays cross the XLA<->Pallas boundary; embedding
    # gather, positional add and mask construction all happen in-kernel.
    ids = jnp.concatenate([claim_ids, ctx_ids], axis=0).astype(jnp.int32)   # (2B, S)
    mask = jnp.concatenate([claim_mask, ctx_mask], axis=0)                  # (2B, S)
    ids_flat = ids.reshape(2 * B * S)
    pos_rows = POS_OFF + jnp.tile(jnp.arange(S, dtype=jnp.int32), 2 * B)
    gather_ids = jnp.stack([ids_flat, pos_rows], axis=1)                    # (2B*S, 2)
    lens_col = jnp.sum(mask, axis=-1, keepdims=True).astype(jnp.int32)      # (2B, 1)

    pooled = encoder_cls_forward(gather_ids, lens_col, params)              # (2B, H)
    claim_embedding = pooled[:B]
    context_embedding = pooled[B:]
    # TODO(synk): the HF tokenizer + pretrained AutoModel weights are not
    # reproducible here; a deterministic synthetic single-layer encoder with
    # the same structure stands in for AutoModel.
    return jnp.concatenate([claim_embedding, context_embedding], axis=1)


def init_params(key, vocab=100, max_pos=8, H=32, F=64):
    ks = jax.random.split(key, 8)
    n = lambda k, s: jax.random.normal(k, s, dtype=jnp.float32) * 0.02

    VP = 128                              # lane-padded combined table height
    assert vocab + max_pos <= VP
    tok = n(ks[0], (vocab, H))
    pos = n(ks[1], (max_pos, H))
    emb = jnp.zeros((VP, H), jnp.float32)
    emb = emb.at[:vocab].set(tok)
    emb = emb.at[VP - max_pos:].set(pos)  # position rows at the table tail

    scale = 1.0 / jnp.sqrt(jnp.float32(H))
    wq = (n(ks[2], (H, H)) * scale).astype(jnp.bfloat16)   # attention scale folded in
    wk = n(ks[3], (H, H)).astype(jnp.bfloat16)
    wv = n(ks[4], (H, H)).astype(jnp.bfloat16)
    wo = n(ks[5], (H, H)).astype(jnp.bfloat16)
    w1 = n(ks[6], (H, F)).astype(jnp.bfloat16)
    w2 = n(ks[7], (F, H)).astype(jnp.bfloat16)

    # Pack all small vectors into one (16, 128) f32 block:
    # rows 0..9 = bq bk bv bo b1 b2 g1 be1 g2 be2  (biases zero, LN gammas one).
    smalls = jnp.zeros((16, 128), jnp.float32)
    smalls = smalls.at[6, :H].set(1.0)    # LN1 gamma
    smalls = smalls.at[8, :H].set(1.0)    # LN2 gamma

    return {"emb": emb, "wq": wq, "wk": wk, "wv": wv, "wo": wo,
            "w1": w1, "w2": w2, "smalls": smalls}


if __name__ == "__main__":
    B, S, H, F, VOCAB = 2, 8, 32, 64, 100
    key = jax.random.PRNGKey(0)
    kp, kc1, kc2 = jax.random.split(key, 3)

    params = init_params(kp, vocab=VOCAB, max_pos=S, H=H, F=F)

    # synthetic "token ids" for claim and context (id 0 = CLS-like token)
    claim_ids = jax.random.randint(kc1, (B, S), 1, VOCAB).at[:, 0].set(0)
    ctx_ids = jax.random.randint(kc2, (B, S), 1, VOCAB).at[:, 0].set(0)
    # attention masks with some padding at the tail (prefix-valid, like a tokenizer)
    claim_mask = (jnp.arange(S)[None, :] < jnp.array([[6], [8]])).astype(jnp.float32)
    ctx_mask = (jnp.arange(S)[None, :] < jnp.array([[8], [5]])).astype(jnp.float32)

    out = text_embedding_forward(claim_ids, claim_mask, ctx_ids, ctx_mask, params)
    out = jax.block_until_ready(out)
    assert out.shape == (B, 2 * H) and out.dtype == jnp.float32
    assert bool(jnp.all(jnp.isfinite(out)))
    print("KERNEL_OK")
</pallas_src>

<mosaic_0001>
module attributes {stable_mosaic.version = 11 : i64} {
  func.func @encoder_cls_kernel(%arg0: i32, %arg1: memref<32x2xi32, #tpu.memory_space<vmem>>, %arg2: memref<4x1xi32, #tpu.memory_space<vmem>>, %arg3: memref<128x32xf32, #tpu.memory_space<vmem>>, %arg4: memref<32x32xbf16, #tpu.memory_space<vmem>>, %arg5: memref<32x32xbf16, #tpu.memory_space<vmem>>, %arg6: memref<32x32xbf16, #tpu.memory_space<vmem>>, %arg7: memref<32x32xbf16, #tpu.memory_space<vmem>>, %arg8: memref<32x64xbf16, #tpu.memory_space<vmem>>, %arg9: memref<64x32xbf16, #tpu.memory_space<vmem>>, %arg10: memref<16x128xf32, #tpu.memory_space<vmem>>, %arg11: memref<4x32xf32, #tpu.memory_space<vmem>>) attributes {dimension_semantics = [#tpu.dimension_semantics<arbitrary>], iteration_bounds = array<i64: 1>, scalar_prefetch = 0 : i64, scratch_operands = 0 : i64, tpu.core_type = #tpu.core_type<tc>, window_params = [{pipeline_mode = #tpu.pipeline_mode<synchronous>, transform_indices = @transform_0, window_bounds = array<i64: 32, 2>}, {pipeline_mode = #tpu.pipeline_mode<synchronous>, transform_indices = @transform_1, window_bounds = array<i64: 4, 1>}, {pipeline_mode = #tpu.pipeline_mode<synchronous>, transform_indices = @transform_2, window_bounds = array<i64: 128, 32>}, {pipeline_mode = #tpu.pipeline_mode<synchronous>, transform_indices = @transform_3, window_bounds = array<i64: 32, 32>}, {pipeline_mode = #tpu.pipeline_mode<synchronous>, transform_indices = @transform_4, window_bounds = array<i64: 32, 32>}, {pipeline_mode = #tpu.pipeline_mode<synchronous>, transform_indices = @transform_5, window_bounds = array<i64: 32, 32>}, {pipeline_mode = #tpu.pipeline_mode<synchronous>, transform_indices = @transform_6, window_bounds = array<i64: 32, 32>}, {pipeline_mode = #tpu.pipeline_mode<synchronous>, transform_indices = @transform_7, window_bounds = array<i64: 32, 64>}, {pipeline_mode = #tpu.pipeline_mode<synchronous>, transform_indices = @transform_8, window_bounds = array<i64: 64, 32>}, {pipeline_mode = #tpu.pipeline_mode<synchronous>, transform_indices = @transform_9, window_bounds = array<i64: 16, 128>}, {pipeline_mode = #tpu.pipeline_mode<synchronous>, transform_indices = @transform_10, window_bounds = array<i64: 4, 32>}]} {
    %c0 = arith.constant 0 : index
    %c0_0 = arith.constant 0 : index
    %0 = vector.load %arg1[%c0, %c0_0] : memref<32x2xi32, #tpu.memory_space<vmem>>, vector<32x1xi32>
    %c0_1 = arith.constant 0 : index
    %c1 = arith.constant 1 : index
    %1 = vector.load %arg1[%c0_1, %c1] : memref<32x2xi32, #tpu.memory_space<vmem>>, vector<32x1xi32>
    %c0_2 = arith.constant 0 : index
    %c0_3 = arith.constant 0 : index
    %2 = vector.load %arg2[%c0_2, %c0_3] : memref<4x1xi32, #tpu.memory_space<vmem>>, vector<4x1xi32>
    %3 = tpu.iota {dimensions = array<i32: 1>} : vector<32x128xi32>
    %4 = vector.broadcast %0 : vector<32x1xi32> to vector<32x128xi32>
    %5 = arith.cmpi eq, %3, %4 : vector<32x128xi32>
    %6 = vector.broadcast %1 : vector<32x1xi32> to vector<32x128xi32>
    %7 = arith.cmpi eq, %3, %6 : vector<32x128xi32>
    %8 = arith.ori %5, %7 : vector<32x128xi1>
    %cst = arith.constant 1.000000e+00 : f32
    %cst_4 = arith.constant 0.000000e+00 : f32
    %9 = vector.broadcast %cst : f32 to vector<32x128xf32>
    %10 = vector.broadcast %cst_4 : f32 to vector<32x128xf32>
    %11 = arith.select %8, %9, %10 : vector<32x128xi1>, vector<32x128xf32>
    %c0_5 = arith.constant 0 : index
    %c0_6 = arith.constant 0 : index
    %12 = vector.load %arg3[%c0_5, %c0_6] : memref<128x32xf32, #tpu.memory_space<vmem>>, vector<128x32xf32>
    %cst_7 = arith.constant dense<0.000000e+00> : vector<32x32xf32>
    %13 = tpu.matmul %11, %12, %cst_7 {dimension_numbers = #tpu.dot_dimension_numbers<[1], [0], [0], [1], [0, 0, 1, 1], [], []>} : vector<32x128xf32>, vector<128x32xf32>, vector<32x32xf32> -> vector<32x32xf32>
    %14 = tpu.iota {dimensions = array<i32: 1>} : vector<4x32xi32>
    %15 = tpu.iota {dimensions = array<i32: 0>} : vector<4x32xi32>
    %c8_i32 = arith.constant 8 : i32
    %16 = vector.broadcast %c8_i32 : i32 to vector<4x32xi32>
    %17 = arith.muli %15, %16 : vector<4x32xi32>
    %18 = arith.cmpi eq, %14, %17 : vector<4x32xi32>
    %cst_8 = arith.constant 1.000000e+00 : f32
    %cst_9 = arith.constant 0.000000e+00 : f32
    %19 = vector.broadcast %cst_8 : f32 to vector<4x32xf32>
    %20 = vector.broadcast %cst_9 : f32 to vector<4x32xf32>
    %21 = arith.select %18, %19, %20 : vector<4x32xi1>, vector<4x32xf32>
    %cst_10 = arith.constant dense<0.000000e+00> : vector<4x32xf32>
    %22 = tpu.matmul %21, %13, %cst_10 {dimension_numbers = #tpu.dot_dimension_numbers<[1], [0], [0], [1], [0, 0, 1, 1], [], []>} : vector<4x32xf32>, vector<32x32xf32>, vector<4x32xf32> -> vector<4x32xf32>
    %c0_11 = arith.constant 0 : index
    %c0_12 = arith.constant 0 : index
    %23 = vector.load %arg10[%c0_11, %c0_12] : memref<16x128xf32, #tpu.memory_space<vmem>>, vector<1x32xf32>
    %c1_13 = arith.constant 1 : index
    %c0_14 = arith.constant 0 : index
    %24 = vector.load %arg10[%c1_13, %c0_14] : memref<16x128xf32, #tpu.memory_space<vmem>>, vector<1x32xf32>
    %c2 = arith.constant 2 : index
    %c0_15 = arith.constant 0 : index
    %25 = vector.load %arg10[%c2, %c0_15] : memref<16x128xf32, #tpu.memory_space<vmem>>, vector<1x32xf32>
    %c3 = arith.constant 3 : index
    %c0_16 = arith.constant 0 : index
    %26 = vector.load %arg10[%c3, %c0_16] : memref<16x128xf32, #tpu.memory_space<vmem>>, vector<1x32xf32>
    %c4 = arith.constant 4 : index
    %c0_17 = arith.constant 0 : index
    %27 = vector.load %arg10[%c4, %c0_17] : memref<16x128xf32, #tpu.memory_space<vmem>>, vector<1x64xf32>
    %c5 = arith.constant 5 : index
    %c0_18 = arith.constant 0 : index
    %28 = vector.load %arg10[%c5, %c0_18] : memref<16x128xf32, #tpu.memory_space<vmem>>, vector<1x32xf32>
    %c6 = arith.constant 6 : index
    %c0_19 = arith.constant 0 : index
    %29 = vector.load %arg10[%c6, %c0_19] : memref<16x128xf32, #tpu.memory_space<vmem>>, vector<1x32xf32>
    %c7 = arith.constant 7 : index
    %c0_20 = arith.constant 0 : index
    %30 = vector.load %arg10[%c7, %c0_20] : memref<16x128xf32, #tpu.memory_space<vmem>>, vector<1x32xf32>
    %c8 = arith.constant 8 : index
    %c0_21 = arith.constant 0 : index
    %31 = vector.load %arg10[%c8, %c0_21] : memref<16x128xf32, #tpu.memory_space<vmem>>, vector<1x32xf32>
    %c9 = arith.constant 9 : index
    %c0_22 = arith.constant 0 : index
    %32 = vector.load %arg10[%c9, %c0_22] : memref<16x128xf32, #tpu.memory_space<vmem>>, vector<1x32xf32>
    %33 = arith.truncf %13 : vector<32x32xf32> to vector<32x32xbf16>
    %c0_23 = arith.constant 0 : index
    %c0_24 = arith.constant 0 : index
    %34 = vector.load %arg5[%c0_23, %c0_24] : memref<32x32xbf16, #tpu.memory_space<vmem>>, vector<32x32xbf16>
    %cst_25 = arith.constant dense<0.000000e+00> : vector<32x32xf32>
    %35 = tpu.matmul %33, %34, %cst_25 {dimension_numbers = #tpu.dot_dimension_numbers<[1], [0], [0], [1], [0, 0, 1, 1], [], []>} : vector<32x32xbf16>, vector<32x32xbf16>, vector<32x32xf32> -> vector<32x32xf32>
    %36 = vector.broadcast %24 : vector<1x32xf32> to vector<32x32xf32>
    %37 = arith.addf %35, %36 : vector<32x32xf32>
    %38 = arith.truncf %13 : vector<32x32xf32> to vector<32x32xbf16>
    %c0_26 = arith.constant 0 : index
    %c0_27 = arith.constant 0 : index
    %39 = vector.load %arg6[%c0_26, %c0_27] : memref<32x32xbf16, #tpu.memory_space<vmem>>, vector<32x32xbf16>
    %cst_28 = arith.constant dense<0.000000e+00> : vector<32x32xf32>
    %40 = tpu.matmul %38, %39, %cst_28 {dimension_numbers = #tpu.dot_dimension_numbers<[1], [0], [0], [1], [0, 0, 1, 1], [], []>} : vector<32x32xbf16>, vector<32x32xbf16>, vector<32x32xf32> -> vector<32x32xf32>
    %41 = vector.broadcast %25 : vector<1x32xf32> to vector<32x32xf32>
    %42 = arith.addf %40, %41 : vector<32x32xf32>
    %43 = arith.truncf %22 : vector<4x32xf32> to vector<4x32xbf16>
    %c0_29 = arith.constant 0 : index
    %c0_30 = arith.constant 0 : index
    %44 = vector.load %arg4[%c0_29, %c0_30] : memref<32x32xbf16, #tpu.memory_space<vmem>>, vector<32x32xbf16>
    %cst_31 = arith.constant dense<0.000000e+00> : vector<4x32xf32>
    %45 = tpu.matmul %43, %44, %cst_31 {dimension_numbers = #tpu.dot_dimension_numbers<[1], [0], [0], [1], [0, 0, 1, 1], [], []>} : vector<4x32xbf16>, vector<32x32xbf16>, vector<4x32xf32> -> vector<4x32xf32>
    %46 = vector.broadcast %23 : vector<1x32xf32> to vector<4x32xf32>
    %47 = arith.addf %45, %46 : vector<4x32xf32>
    %48 = arith.truncf %47 : vector<4x32xf32> to vector<4x32xbf16>
    %49 = arith.truncf %37 : vector<32x32xf32> to vector<32x32xbf16>
    %cst_32 = arith.constant dense<0.000000e+00> : vector<4x32xf32>
    %50 = tpu.matmul %48, %49, %cst_32 {dimension_numbers = #tpu.dot_dimension_numbers<[1], [1], [0], [0], [0, 0, 1, 0], [], []>} : vector<4x32xbf16>, vector<32x32xbf16>, vector<4x32xf32> -> vector<4x32xf32>
    %51 = arith.cmpi sge, %14, %17 : vector<4x32xi32>
    %52 = vector.broadcast %2 : vector<4x1xi32> to vector<4x32xi32>
    %53 = arith.addi %17, %52 : vector<4x32xi32>
    %54 = arith.cmpi slt, %14, %53 : vector<4x32xi32>
    %55 = arith.andi %51, %54 : vector<4x32xi1>
    %cst_33 = arith.constant -1.000000e+30 : f32
    %56 = vector.broadcast %cst_33 : f32 to vector<4x32xf32>
    %57 = arith.select %55, %50, %56 : vector<4x32xi1>, vector<4x32xf32>
    %cst_34 = arith.constant dense<0xFF800000> : vector<4xf32>
    %58 = vector.multi_reduction <maximumf>, %57, %cst_34 [1] : vector<4x32xf32> to vector<4xf32>
    %59 = vector.shape_cast %58 : vector<4xf32> to vector<4x1xf32>
    %60 = vector.broadcast %59 : vector<4x1xf32> to vector<4x32xf32>
    %61 = arith.subf %57, %60 : vector<4x32xf32>
    %62 = math.exp %61 : vector<4x32xf32>
    %cst_35 = arith.constant dense<0.000000e+00> : vector<4xf32>
    %63 = vector.multi_reduction <add>, %62, %cst_35 [1] : vector<4x32xf32> to vector<4xf32>
    %64 = vector.shape_cast %63 : vector<4xf32> to vector<4x1xf32>
    %65 = tpu.reciprocal %64 {approx = true} : vector<4x1xf32> -> vector<4x1xf32>
    %66 = vector.broadcast %65 : vector<4x1xf32> to vector<4x32xf32>
    %67 = arith.mulf %62, %66 : vector<4x32xf32>
    %68 = arith.truncf %67 : vector<4x32xf32> to vector<4x32xbf16>
    %69 = arith.truncf %42 : vector<32x32xf32> to vector<32x32xbf16>
    %cst_36 = arith.constant dense<0.000000e+00> : vector<4x32xf32>
    %70 = tpu.matmul %68, %69, %cst_36 {dimension_numbers = #tpu.dot_dimension_numbers<[1], [0], [0], [1], [0, 0, 1, 1], [], []>} : vector<4x32xbf16>, vector<32x32xbf16>, vector<4x32xf32> -> vector<4x32xf32>
    %71 = arith.truncf %70 : vector<4x32xf32> to vector<4x32xbf16>
    %c0_37 = arith.constant 0 : index
    %c0_38 = arith.constant 0 : index
    %72 = vector.load %arg7[%c0_37, %c0_38] : memref<32x32xbf16, #tpu.memory_space<vmem>>, vector<32x32xbf16>
    %cst_39 = arith.constant dense<0.000000e+00> : vector<4x32xf32>
    %73 = tpu.matmul %71, %72, %cst_39 {dimension_numbers = #tpu.dot_dimension_numbers<[1], [0], [0], [1], [0, 0, 1, 1], [], []>} : vector<4x32xbf16>, vector<32x32xbf16>, vector<4x32xf32> -> vector<4x32xf32>
    %74 = vector.broadcast %26 : vector<1x32xf32> to vector<4x32xf32>
    %75 = arith.addf %73, %74 : vector<4x32xf32>
    %76 = arith.addf %22, %75 : vector<4x32xf32>
    %cst_40 = arith.constant dense<0.000000e+00> : vector<4xf32>
    %77 = vector.multi_reduction <add>, %76, %cst_40 [1] : vector<4x32xf32> to vector<4xf32>
    %78 = vector.shape_cast %77 : vector<4xf32> to vector<4x1xf32>
    %cst_41 = arith.constant 3.200000e+01 : f32
    %79 = vector.broadcast %cst_41 : f32 to vector<4x1xf32>
    %80 = arith.divf %78, %79 : vector<4x1xf32>
    %81 = vector.broadcast %80 : vector<4x1xf32> to vector<4x32xf32>
    %82 = arith.subf %76, %81 : vector<4x32xf32>
    %83 = arith.mulf %82, %82 : vector<4x32xf32>
    %cst_42 = arith.constant dense<0.000000e+00> : vector<4xf32>
    %84 = vector.multi_reduction <add>, %83, %cst_42 [1] : vector<4x32xf32> to vector<4xf32>
    %85 = vector.shape_cast %84 : vector<4xf32> to vector<4x1xf32>
    %cst_43 = arith.constant 3.200000e+01 : f32
    %86 = vector.broadcast %cst_43 : f32 to vector<4x1xf32>
    %87 = arith.divf %85, %86 : vector<4x1xf32>
    %cst_44 = arith.constant 9.99999996E-13 : f32
    %88 = vector.broadcast %cst_44 : f32 to vector<4x1xf32>
    %89 = arith.addf %87, %88 : vector<4x1xf32>
    %90 = math.rsqrt %89 : vector<4x1xf32>
    %91 = vector.broadcast %90 : vector<4x1xf32> to vector<4x32xf32>
    %92 = arith.mulf %82, %91 : vector<4x32xf32>
    %93 = vector.broadcast %29 : vector<1x32xf32> to vector<4x32xf32>
    %94 = arith.mulf %92, %93 : vector<4x32xf32>
    %95 = vector.broadcast %30 : vector<1x32xf32> to vector<4x32xf32>
    %96 = arith.addf %94, %95 : vector<4x32xf32>
    %97 = arith.truncf %96 : vector<4x32xf32> to vector<4x32xbf16>
    %c0_45 = arith.constant 0 : index
    %c0_46 = arith.constant 0 : index
    %98 = vector.load %arg8[%c0_45, %c0_46] : memref<32x64xbf16, #tpu.memory_space<vmem>>, vector<32x64xbf16>
    %cst_47 = arith.constant dense<0.000000e+00> : vector<4x64xf32>
    %99 = tpu.matmul %97, %98, %cst_47 {dimension_numbers = #tpu.dot_dimension_numbers<[1], [0], [0], [1], [0, 0, 1, 1], [], []>} : vector<4x32xbf16>, vector<32x64xbf16>, vector<4x64xf32> -> vector<4x64xf32>
    %100 = vector.broadcast %27 : vector<1x64xf32> to vector<4x64xf32>
    %101 = arith.addf %99, %100 : vector<4x64xf32>
    %102 = arith.mulf %101, %101 : vector<4x64xf32>
    %103 = arith.mulf %101, %102 : vector<4x64xf32>
    %cst_48 = arith.constant 4.471500e-02 : f32
    %104 = vector.broadcast %cst_48 : f32 to vector<4x64xf32>
    %105 = arith.mulf %104, %103 : vector<4x64xf32>
    %106 = arith.addf %101, %105 : vector<4x64xf32>
    %cst_49 = arith.constant 0.797884583 : f32
    %107 = vector.broadcast %cst_49 : f32 to vector<4x64xf32>
    %108 = arith.mulf %107, %106 : vector<4x64xf32>
    %109 = math.tanh %108 : vector<4x64xf32>
    %cst_50 = arith.constant 1.000000e+00 : f32
    %110 = vector.broadcast %cst_50 : f32 to vector<4x64xf32>
    %111 = arith.addf %110, %109 : vector<4x64xf32>
    %cst_51 = arith.constant 5.000000e-01 : f32
    %112 = vector.broadcast %cst_51 : f32 to vector<4x64xf32>
    %113 = arith.mulf %112, %111 : vector<4x64xf32>
    %114 = arith.mulf %101, %113 : vector<4x64xf32>
    %115 = arith.truncf %114 : vector<4x64xf32> to vector<4x64xbf16>
    %c0_52 = arith.constant 0 : index
    %c0_53 = arith.constant 0 : index
    %116 = vector.load %arg9[%c0_52, %c0_53] : memref<64x32xbf16, #tpu.memory_space<vmem>>, vector<64x32xbf16>
    %cst_54 = arith.constant dense<0.000000e+00> : vector<4x32xf32>
    %117 = tpu.matmul %115, %116, %cst_54 {dimension_numbers = #tpu.dot_dimension_numbers<[1], [0], [0], [1], [0, 0, 1, 1], [], []>} : vector<4x64xbf16>, vector<64x32xbf16>, vector<4x32xf32> -> vector<4x32xf32>
    %118 = vector.broadcast %28 : vector<1x32xf32> to vector<4x32xf32>
    %119 = arith.addf %117, %118 : vector<4x32xf32>
    %120 = arith.addf %96, %119 : vector<4x32xf32>
    %cst_55 = arith.constant dense<0.000000e+00> : vector<4xf32>
    %121 = vector.multi_reduction <add>, %120, %cst_55 [1] : vector<4x32xf32> to vector<4xf32>
    %122 = vector.shape_cast %121 : vector<4xf32> to vector<4x1xf32>
    %cst_56 = arith.constant 3.200000e+01 : f32
    %123 = vector.broadcast %cst_56 : f32 to vector<4x1xf32>
    %124 = arith.divf %122, %123 : vector<4x1xf32>
    %125 = vector.broadcast %124 : vector<4x1xf32> to vector<4x32xf32>
    %126 = arith.subf %120, %125 : vector<4x32xf32>
    %127 = arith.mulf %126, %126 : vector<4x32xf32>
    %cst_57 = arith.constant dense<0.000000e+00> : vector<4xf32>
    %128 = vector.multi_reduction <add>, %127, %cst_57 [1] : vector<4x32xf32> to vector<4xf32>
    %129 = vector.shape_cast %128 : vector<4xf32> to vector<4x1xf32>
    %cst_58 = arith.constant 3.200000e+01 : f32
    %130 = vector.broadcast %cst_58 : f32 to vector<4x1xf32>
    %131 = arith.divf %129, %130 : vector<4x1xf32>
    %cst_59 = arith.constant 9.99999996E-13 : f32
    %132 = vector.broadcast %cst_59 : f32 to vector<4x1xf32>
    %133 = arith.addf %131, %132 : vector<4x1xf32>
    %134 = math.rsqrt %133 : vector<4x1xf32>
    %135 = vector.broadcast %134 : vector<4x1xf32> to vector<4x32xf32>
    %136 = arith.mulf %126, %135 : vector<4x32xf32>
    %137 = vector.broadcast %31 : vector<1x32xf32> to vector<4x32xf32>
    %138 = arith.mulf %136, %137 : vector<4x32xf32>
    %139 = vector.broadcast %32 : vector<1x32xf32> to vector<4x32xf32>
    %140 = arith.addf %138, %139 : vector<4x32xf32>
    %c0_60 = arith.constant 0 : index
    %c0_61 = arith.constant 0 : index
    %141 = vector.load %arg11[%c0_60, %c0_61] : memref<4x32xf32, #tpu.memory_space<vmem>>, vector<4x32xf32>
    tpu.vector_store %arg11[%c0_60, %c0_61], %140 {strides = array<i32>} : memref<4x32xf32, #tpu.memory_space<vmem>>, vector<4x32xf32>,
    return
  }
  func.func @transform_0(%arg0: i32) -> (i32, i32) {
    %c0_i32 = arith.constant 0 : i32
    %c0_i32_0 = arith.constant 0 : i32
    %c0_i32_1 = arith.constant 0 : i32
    return %c0_i32, %c0_i32_0 : i32, i32
  }
  func.func @transform_1(%arg0: i32) -> (i32, i32) {
    %c0_i32 = arith.constant 0 : i32
    %c0_i32_0 = arith.constant 0 : i32
    %c0_i32_1 = arith.constant 0 : i32
    return %c0_i32, %c0_i32_0 : i32, i32
  }
  func.func @transform_2(%arg0: i32) -> (i32, i32) {
    %c0_i32 = arith.constant 0 : i32
    %c0_i32_0 = arith.constant 0 : i32
    %c0_i32_1 = arith.constant 0 : i32
    return %c0_i32, %c0_i32_0 : i32, i32
  }
  func.func @transform_3(%arg0: i32) -> (i32, i32) {
    %c0_i32 = arith.constant 0 : i32
    %c0_i32_0 = arith.constant 0 : i32
    %c0_i32_1 = arith.constant 0 : i32
    return %c0_i32, %c0_i32_0 : i32, i32
  }
  func.func @transform_4(%arg0: i32) -> (i32, i32) {
    %c0_i32 = arith.constant 0 : i32
    %c0_i32_0 = arith.constant 0 : i32
    %c0_i32_1 = arith.constant 0 : i32
    return %c0_i32, %c0_i32_0 : i32, i32
  }
  func.func @transform_5(%arg0: i32) -> (i32, i32) {
    %c0_i32 = arith.constant 0 : i32
    %c0_i32_0 = arith.constant 0 : i32
    %c0_i32_1 = arith.constant 0 : i32
    return %c0_i32, %c0_i32_0 : i32, i32
  }
  func.func @transform_6(%arg0: i32) -> (i32, i32) {
    %c0_i32 = arith.constant 0 : i32
    %c0_i32_0 = arith.constant 0 : i32
    %c0_i32_1 = arith.constant 0 : i32
    return %c0_i32, %c0_i32_0 : i32, i32
  }
  func.func @transform_7(%arg0: i32) -> (i32, i32) {
    %c0_i32 = arith.constant 0 : i32
    %c0_i32_0 = arith.constant 0 : i32
    %c0_i32_1 = arith.constant 0 : i32
    return %c0_i32, %c0_i32_0 : i32, i32
  }
  func.func @transform_8(%arg0: i32) -> (i32, i32) {
    %c0_i32 = arith.constant 0 : i32
    %c0_i32_0 = arith.constant 0 : i32
    %c0_i32_1 = arith.constant 0 : i32
    return %c0_i32, %c0_i32_0 : i32, i32
  }
  func.func @transform_9(%arg0: i32) -> (i32, i32) {
    %c0_i32 = arith.constant 0 : i32
    %c0_i32_0 = arith.constant 0 : i32
    %c0_i32_1 = arith.constant 0 : i32
    return %c0_i32, %c0_i32_0 : i32, i32
  }
  func.func @transform_10(%arg0: i32) -> (i32, i32) {
    %c0_i32 = arith.constant 0 : i32
    %c0_i32_0 = arith.constant 0 : i32
    %c0_i32_1 = arith.constant 0 : i32
    return %c0_i32, %c0_i32_0 : i32, i32
  }
}

</mosaic_0001>

<llo_original>
// kernel: tpu_custom_call.1
$region0: #{tpu_custom_call.1}
  #allocation0 [shape = 'u32[]', space=smem, size = 0x4, offset = 0x4, fixed_abs, tag = 'smem constant byte address 0x4 - core index']
  #allocation1 [shape = 'u32[72,128]{1,0:T(1,128)}', space=vmem, size = 0x9000, scoped, tag = 'internal scratch']
  %s0 = inlined_call_operand.vmem [shape: s32[32,2], index: 0, kind: input, shape index: {}]
  %s1 = inlined_call_operand.vmem [shape: s32[4,1], index: 1, kind: input, shape index: {}]
  %s2 = inlined_call_operand.vmem [shape: f32[128,32], index: 2, kind: input, shape index: {}]
  %s3 = inlined_call_operand.vmem [shape: bf16[32,32], index: 3, kind: input, shape index: {}]
  %s4 = inlined_call_operand.vmem [shape: bf16[32,32], index: 4, kind: input, shape index: {}]
  %s5 = inlined_call_operand.vmem [shape: bf16[32,32], index: 5, kind: input, shape index: {}]
  %s6 = inlined_call_operand.vmem [shape: bf16[32,32], index: 6, kind: input, shape index: {}]
  %s7 = inlined_call_operand.vmem [shape: bf16[32,64], index: 7, kind: input, shape index: {}]
  %s8 = inlined_call_operand.vmem [shape: bf16[64,32], index: 8, kind: input, shape index: {}]
  %s9 = inlined_call_operand.vmem [shape: f32[16,128], index: 9, kind: input, shape index: {}]
  %s10 = inlined_call_operand.hbm [shape: f32[4,32], index: 10, kind: output, shape index: {}]
  %s11 = sld [smem:[#allocation0]]
  $region50: #{tpu_custom_call.1} parent=0
    _
  %s13 = ssub.s32 1, %s11
  %s14 = scalar_select 0, %s13, %s11
  $region1: #{tpu_custom_call.1} parent=0
    #allocation2 [shape = 'u8[2048]{0}', space=vmem, size = 0x800, scoped, tag = 'output window, operand 0, single buffered']
    #allocation3 [shape = 's32[1]{0}', space=sflag, size = 0x4, scoped, tag = 'scoped memory for tpu_custom_call.1']
    %15 = vsyncpa [#allocation3], 0
    // Predicated region
    $region2: #{tpu_custom_call.1} parent=1 // pred_check
      _
    $region3: #{tpu_custom_call.1} parent=1 // pred_check_branch
      %17 = sbr.rel (0) target = $region5
    $region4: #{tpu_custom_call.1} parent=1 // pred_region
      _
    $region5: #{tpu_custom_call.1} parent=1 // pred_fallthru
      _
    // Predicated region
    $region6: #{tpu_custom_call.1} parent=1 // pred_check
      _
    $region7: #{tpu_custom_call.1} parent=1 // pred_check_branch
      %19 = sbr.rel (0) target = $region9
    $region8: #{tpu_custom_call.1} parent=1 // pred_region
      _
    $region9: #{tpu_custom_call.1} parent=1 // pred_fallthru
      _
    // Predicated region
    $region10: #{tpu_custom_call.1} parent=1 // pred_check
      _
    $region11: #{tpu_custom_call.1} parent=1 // pred_check_branch
      %21 = sbr.rel (0) target = $region13
    $region12: #{tpu_custom_call.1} parent=1 // pred_region
      _
    $region13: #{tpu_custom_call.1} parent=1 // pred_fallthru
      _
    // Predicated region
    $region14: #{tpu_custom_call.1} parent=1 // pred_check
      _
    $region15: #{tpu_custom_call.1} parent=1 // pred_check_branch
      %23 = sbr.rel (0) target = $region17
    $region16: #{tpu_custom_call.1} parent=1 // pred_region
      _
    $region17: #{tpu_custom_call.1} parent=1 // pred_fallthru
      _
    // Predicated region
    $region18: #{tpu_custom_call.1} parent=1 // pred_check
      _
    $region19: #{tpu_custom_call.1} parent=1 // pred_check_branch
      %25 = sbr.rel (0) target = $region21
    $region20: #{tpu_custom_call.1} parent=1 // pred_region
      _
    $region21: #{tpu_custom_call.1} parent=1 // pred_fallthru
      _
    // Predicated region
    $region22: #{tpu_custom_call.1} parent=1 // pred_check
      _
    $region23: #{tpu_custom_call.1} parent=1 // pred_check_branch
      %27 = sbr.rel (0) target = $region25
    $region24: #{tpu_custom_call.1} parent=1 // pred_region
      _
    $region25: #{tpu_custom_call.1} parent=1 // pred_fallthru
      _
    // Predicated region
    $region26: #{tpu_custom_call.1} parent=1 // pred_check
      _
    $region27: #{tpu_custom_call.1} parent=1 // pred_check_branch
      %29 = sbr.rel (0) target = $region29
    $region28: #{tpu_custom_call.1} parent=1 // pred_region
      _
    $region29: #{tpu_custom_call.1} parent=1 // pred_fallthru
      _
    // Predicated region
    $region30: #{tpu_custom_call.1} parent=1 // pred_check
      _
    $region31: #{tpu_custom_call.1} parent=1 // pred_check_branch
      %31 = sbr.rel (0) target = $region33
    $region32: #{tpu_custom_call.1} parent=1 // pred_region
      _
    $region33: #{tpu_custom_call.1} parent=1 // pred_fallthru
      _
    // Predicated region
    $region34: #{tpu_custom_call.1} parent=1 // pred_check
      _
    $region35: #{tpu_custom_call.1} parent=1 // pred_check_branch
      %33 = sbr.rel (0) target = $region37
    $region36: #{tpu_custom_call.1} parent=1 // pred_region
      _
    $region37: #{tpu_custom_call.1} parent=1 // pred_fallthru
      _
    // Predicated region
    $region38: #{tpu_custom_call.1} parent=1 // pred_check
      _
    $region39: #{tpu_custom_call.1} parent=1 // pred_check_branch
      %35 = sbr.rel (0) target = $region41
    $region40: #{tpu_custom_call.1} parent=1 // pred_region
      _
    $region41: #{tpu_custom_call.1} parent=1 // pred_fallthru
      _
    %v37 = vld [vmem:[%s0] sm:$0xff]
    %v38 = vld [vmem:[%s0 + $0x8] sm:$0xff]
    %v39 = vld [vmem:[%s0 + $0x10] sm:$0xff]
    %v40 = vld [vmem:[%s0 + $0x18] sm:$0xff]
    %v41 = vld [vmem:[%s1] sm:$0xf]
    %v42 = vlaneseq
    %v43 = vand.u32 %v42, 127
    %44 = vset.pattern.permute.xlu0 0
    %45 = vperm.xlu0 %44, %v37
    %v46 = vpop.permute.xlu0 %45
    %47 = vset.pattern.permute.xlu0 0
    %48 = vperm.xlu0 %47, %v38
    %v49 = vpop.permute.xlu0 %48
    %50 = vset.pattern.permute.xlu0 0
    %51 = vperm.xlu0 %50, %v39
    %v52 = vpop.permute.xlu0 %51
    %53 = vset.pattern.permute.xlu0 0
    %54 = vperm.xlu0 %53, %v40
    %v55 = vpop.permute.xlu0 %54
    %vm56 = vcmp.eq.s32.totalorder %v43, %v46
    %vm57 = vcmp.eq.s32.totalorder %v43, %v49
    %vm58 = vcmp.eq.s32.totalorder %v43, %v52
    %vm59 = vcmp.eq.s32.totalorder %v43, %v55
    %60 = vset.pattern.permute.xlu0 1
    %61 = vperm.xlu0 %60, %v37
    %v62 = vpop.permute.xlu0 %61
    %63 = vset.pattern.permute.xlu0 1
    %64 = vperm.xlu0 %63, %v38
    %v65 = vpop.permute.xlu0 %64
    %66 = vset.pattern.permute.xlu0 1
    %67 = vperm.xlu0 %66, %v39
    %v68 = vpop.permute.xlu0 %67
    %69 = vset.pattern.permute.xlu0 1
    %70 = vperm.xlu0 %69, %v40
    %v71 = vpop.permute.xlu0 %70
    %vm72 = vcmp.eq.s32.totalorder %v43, %v62
    %vm73 = vcmp.eq.s32.totalorder %v43, %v65
    %vm74 = vcmp.eq.s32.totalorder %v43, %v68
    %vm75 = vcmp.eq.s32.totalorder %v43, %v71
    %vm76 = vmor %vm56, %vm72
    %vm77 = vmor %vm57, %vm73
    %vm78 = vmor %vm58, %vm74
    %vm79 = vmor %vm59, %vm75
    %v80 = vsel %vm76, 1.0, 0.0
    %v81 = vsel %vm77, 1.0, 0.0
    %v82 = vsel %vm78, 1.0, 0.0
    %v83 = vsel %vm79, 1.0, 0.0
    %v84 = vld [vmem:[%s2] sm:$0xff]
    %v85 = vld [vmem:[%s2 + $0x8] sm:$0xff]
    %v86 = vld [vmem:[%s2 + $0x10] sm:$0xff]
    %v87 = vld [vmem:[%s2 + $0x18] sm:$0xff]
    %v88 = vld [vmem:[%s2 + $0x20] sm:$0xff]
    %v89 = vld [vmem:[%s2 + $0x28] sm:$0xff]
    %v90 = vld [vmem:[%s2 + $0x30] sm:$0xff]
    %v91 = vld [vmem:[%s2 + $0x38] sm:$0xff]
    %v92 = vld [vmem:[%s2 + $0x40] sm:$0xff]
    %v93 = vld [vmem:[%s2 + $0x48] sm:$0xff]
    %v94 = vld [vmem:[%s2 + $0x50] sm:$0xff]
    %v95 = vld [vmem:[%s2 + $0x58] sm:$0xff]
    %v96 = vld [vmem:[%s2 + $0x60] sm:$0xff]
    %v97 = vld [vmem:[%s2 + $0x68] sm:$0xff]
    %v98 = vld [vmem:[%s2 + $0x70] sm:$0xff]
    %v99 = vld [vmem:[%s2 + $0x78] sm:$0xff]
    %100 = vmatpush.msra.mxu0 %v99
    %101 = vmatpush.msra.mxu0 %v98
    %102 = vmatpush.msra.mxu0 %v97
    %103 = vmatpush.msra.mxu0 %v96
    %104 = vmatpush.msra.mxu0 %v95
    %105 = vmatpush.msra.mxu0 %v94
    %106 = vmatpush.msra.mxu0 %v93
    %107 = vmatpush.msra.mxu0 %v92
    %108 = vmatpush.msra.mxu0 %v91
    %109 = vmatpush.msra.mxu0 %v90
    %110 = vmatpush.msra.mxu0 %v89
    %111 = vmatpush.msra.mxu0 %v88
    %112 = vmatpush.msra.mxu0 %v87
    %113 = vmatpush.msra.mxu0 %v86
    %114 = vmatpush.msra.mxu0 %v85
    %115 = vmatpush.msra.mxu0 %v84
    %116 = vmatmul.f32.gmra.mxu0 %v80
    %v117 = vpop.f32.mrf.mxu0
    %v118 = vadd.f32 0.0, %v117
    %119 = vmatmul.f32.gmra.mxu0 %v81
    %v120 = vpop.f32.mrf.mxu0
    %v121 = vadd.f32 0.0, %v120
    %122 = vmatmul.f32.gmra.mxu0 %v82
    %v123 = vpop.f32.mrf.mxu0
    %v124 = vadd.f32 0.0, %v123
    %125 = vmatmul.f32.gmra.mxu0 %v83
    %v126 = vpop.f32.mrf.mxu0
    %v127 = vadd.f32 0.0, %v126
    %128 = vdwg.mxu0
    %v129 = vlaneseq
    %v130 = vshrl.u32 %v129, 7
    %v131 = vmul.u32 %v130, 8
    %vm132 = vcmp.eq.s32.totalorder %v43, %v131
    %v133 = vsel %vm132, 1.0, 0.0
    %vm134 = vcmask 261120
    %v136 = vsel %vm134, %v133, 0
    %138 = vmatpush.msra.mxu0 0.0
    %139 = vmatpush.msra.mxu0 0.0
    %140 = vmatpush.msra.mxu0 0.0
    %141 = vmatpush.msra.mxu0 0.0
    %142 = vmatpush.msra.mxu0 0.0
    %143 = vmatpush.msra.mxu0 0.0
    %144 = vmatpush.msra.mxu0 0.0
    %145 = vmatpush.msra.mxu0 0.0
    %146 = vmatpush.msra.mxu0 0.0
    %147 = vmatpush.msra.mxu0 0.0
    %148 = vmatpush.msra.mxu0 0.0
    %149 = vmatpush.msra.mxu0 0.0
    %150 = vmatpush.msra.mxu0 %v127
    %151 = vmatpush.msra.mxu0 %v124
    %152 = vmatpush.msra.mxu0 %v121
    %153 = vmatpush.msra.mxu0 %v118
    %154 = vmatmul.f32.gmra.mxu0 %v136
    %v155 = vpop.f32.mrf.mxu0
    %v156 = vadd.f32 0.0, %v155
    %157 = vdwg.mxu0
    %v158 = vld [vmem:[%s9] sm:$0x1]
    %v159 = vld [vmem:[%s9 + $0x1] sm:$0x1]
    %v160 = vld [vmem:[%s9 + $0x2] sm:$0x1]
    %v161 = vld [vmem:[%s9 + $0x3] sm:$0x1]
    %v162 = vld [vmem:[%s9 + $0x4] sm:$0x1]
    %v163 = vld [vmem:[%s9 + $0x5] sm:$0x1]
    %v164 = vld [vmem:[%s9 + $0x6] sm:$0x1]
    %v165 = vld [vmem:[%s9 + $0x7] sm:$0x1]
    %v166 = vld [vmem:[%s9 + $0x8] sm:$0x1]
    %v167 = vld [vmem:[%s9 + $0x9] sm:$0x1]
    %v168 = vpack.c.bf16 %v121, %v118
    %v169 = vpack.c.bf16 %v127, %v124
    %v170 = vld [vmem:[%s4] sm:$0xf]
    %v171 = vld [vmem:[%s4 + $0x4] sm:$0xf]
    %v172 = vld [vmem:[%s4 + $0x8] sm:$0xf]
    %v173 = vld [vmem:[%s4 + $0xc] sm:$0xf]
    %v174 = vperm.slane %v159, 0
    %v179 = vunpack.c.l.b16 %v170
    %v180 = vunpack.c.l.b16 %v171
    %v181 = vunpack.c.l.b16 %v172
    %v182 = vunpack.c.l.b16 %v173
    %v183 = vpack.c.b16 %v180, %v179
    %v184 = vpack.c.b16 %v182, %v181
    %v188 = vsel %vm134, %v168, 0
    %v191 = vsel %vm134, %v169, 0
    %193 = vmatpush.bf16.msra.mxu0 0
    %194 = vmatpush.bf16.msra.mxu0 0
    %195 = vmatpush.bf16.msra.mxu0 0
    %196 = vmatpush.bf16.msra.mxu0 0
    %197 = vmatpush.bf16.msra.mxu0 0
    %198 = vmatpush.bf16.msra.mxu0 0
    %199 = vmatpush.bf16.msra.mxu0 %v184
    %200 = vmatpush.bf16.msra.mxu0 %v183
    %201 = vmatmul.bf16.gmra.mxu0 %v188
    %v202 = vpop.f32.mrf.mxu0
    %v203 = vadd.f32 %v174, %v202
    %v204 = vpop.f32.mrf.mxu0
    %v205 = vadd.f32 %v174, %v204
    %206 = vmatmul.bf16.gmra.mxu0 %v191
    %v207 = vpop.f32.mrf.mxu0
    %v208 = vadd.f32 %v174, %v207
    %v209 = vpop.f32.mrf.mxu0
    %v210 = vadd.f32 %v174, %v209
    %211 = vdwg.mxu0
    %v212 = vld [vmem:[%s5] sm:$0xf]
    %v213 = vld [vmem:[%s5 + $0x4] sm:$0xf]
    %v214 = vld [vmem:[%s5 + $0x8] sm:$0xf]
    %v215 = vld [vmem:[%s5 + $0xc] sm:$0xf]
    %v216 = vperm.slane %v160, 0
    %v221 = vunpack.c.l.b16 %v212
    %v222 = vunpack.c.l.b16 %v213
    %v223 = vunpack.c.l.b16 %v214
    %v224 = vunpack.c.l.b16 %v215
    %v225 = vpack.c.b16 %v222, %v221
    %v226 = vpack.c.b16 %v224, %v223
    %229 = vmatpush.bf16.msra.mxu0 0
    %230 = vmatpush.bf16.msra.mxu0 0
    %231 = vmatpush.bf16.msra.mxu0 0
    %232 = vmatpush.bf16.msra.mxu0 0
    %233 = vmatpush.bf16.msra.mxu0 0
    %234 = vmatpush.bf16.msra.mxu0 0
    %235 = vmatpush.bf16.msra.mxu0 %v226
    %236 = vmatpush.bf16.msra.mxu0 %v225
    %237 = vmatmul.bf16.gmra.mxu0 %v188
    %v238 = vpop.f32.mrf.mxu0
    %v239 = vadd.f32 %v216, %v238
    %v240 = vpop.f32.mrf.mxu0
    %v241 = vadd.f32 %v216, %v240
    %242 = vmatmul.bf16.gmra.mxu0 %v191
    %v243 = vpop.f32.mrf.mxu0
    %v244 = vadd.f32 %v216, %v243
    %v245 = vpop.f32.mrf.mxu0
    %v246 = vadd.f32 %v216, %v245
    %247 = vdwg.mxu0
    %v248 = vpack.c.bf16 %v156, %v156
    %v249 = vld [vmem:[%s3] sm:$0xf]
    %v250 = vld [vmem:[%s3 + $0x4] sm:$0xf]
    %v251 = vld [vmem:[%s3 + $0x8] sm:$0xf]
    %v252 = vld [vmem:[%s3 + $0xc] sm:$0xf]
    %v253 = vperm.slane %v158, 0
    %v258 = vunpack.c.l.b16 %v249
    %v259 = vunpack.c.l.b16 %v250
    %v260 = vunpack.c.l.b16 %v251
    %v261 = vunpack.c.l.b16 %v252
    %v262 = vpack.c.b16 %v259, %v258
    %v263 = vpack.c.b16 %v261, %v260
    %v267 = vsel %vm134, %v248, 0
    %269 = vmatpush.bf16.msra.mxu0 0
    %270 = vmatpush.bf16.msra.mxu0 0
    %271 = vmatpush.bf16.msra.mxu0 0
    %272 = vmatpush.bf16.msra.mxu0 0
    %273 = vmatpush.bf16.msra.mxu0 0
    %274 = vmatpush.bf16.msra.mxu0 0
    %275 = vmatpush.bf16.msra.mxu0 %v263
    %276 = vmatpush.bf16.msra.mxu0 %v262
    %277 = vmatmul.bf16.gmra.mxu0 %v267
    %v278 = vpop.f32.mrf.mxu0
    %v279 = vadd.f32 %v253, %v278
    %v280 = vpop.f32.mrf.mxu0
    %281 = vdwg.mxu0
    %v282 = vpack.c.bf16 %v279, %v279
    %v283 = vpack.c.bf16 %v205, %v203
    %v284 = vpack.c.bf16 %v210, %v208
    %v286 = vsel %vm134, %v282, 0
    %v289 = vsel %vm134, %v283, 0
    %v292 = vsel %vm134, %v284, 0
    %294 = vmatpush.bf16.xpose.msra.mxu0 0
    %295 = vmatpush.bf16.xpose.msra.mxu0 0
    %296 = vmatpush.bf16.xpose.msra.mxu0 0
    %297 = vmatpush.bf16.xpose.msra.mxu0 0
    %298 = vmatpush.bf16.xpose.msra.mxu0 0
    %299 = vmatpush.bf16.xpose.msra.mxu0 0
    %300 = vmatpush.bf16.xpose.msra.mxu0 %v292
    %301 = vmatpush.bf16.xpose.msra.mxu0 %v289
    %302 = vmatmul.bf16.gmra.mxu0 %v286
    %v303 = vpop.f32.mrf.mxu0
    %v304 = vadd.f32 0.0, %v303
    %v305 = vpop.f32.mrf.mxu0
    %306 = vdwg.mxu0
    %vm307 = vcmp.ge.s32.totalorder %v43, %v131
    %308 = vset.pattern.permute.xlu0 0
    %309 = vperm.xlu0 %308, %v41
    %v310 = vpop.permute.xlu0 %309
    %v311 = vadd.s32 %v131, %v310
    %vm312 = vcmp.lt.s32.totalorder %v43, %v311
    %vm313 = vmand %vm307, %vm312
    %v314 = vsel %vm313, %v304, -1e+30
    %vm315 = vcmask 257024
    %v316 = vsel %vm315, %v314, -inf
    %317 = vmax.xlane.f32.xlu0 %v316
    %v318 = vpop.xlane.xlu0 %317
    %v319 = vsub.f32 %v314, %v318
    %v320 = vmul.f32 %v319, 1.442695
    %v321 = vpow.pop %v320
    %v322 = vsel %vm315, %v321, 0.0
    %323 = vadd.xlane.f32.xlu0 %v322
    %v324 = vpop.xlane.xlu0 %323
    %v325 = vrcp.pop %v324
    %v326 = vmul.f32 %v321, %v325
    %v327 = vpack.c.bf16 %v326, %v326
    %v328 = vpack.c.bf16 %v241, %v239
    %v329 = vpack.c.bf16 %v246, %v244
    %v331 = vsel %vm134, %v327, 0
    %333 = vmatpush.bf16.msra.mxu0 0
    %334 = vmatpush.bf16.msra.mxu0 0
    %335 = vmatpush.bf16.msra.mxu0 0
    %336 = vmatpush.bf16.msra.mxu0 0
    %337 = vmatpush.bf16.msra.mxu0 0
    %338 = vmatpush.bf16.msra.mxu0 0
    %339 = vmatpush.bf16.msra.mxu0 %v329
    %340 = vmatpush.bf16.msra.mxu0 %v328
    %341 = vmatmul.bf16.gmra.mxu0 %v331
    %v342 = vpop.f32.mrf.mxu0
    %v343 = vadd.f32 0.0, %v342
    %v344 = vpop.f32.mrf.mxu0
    %345 = vdwg.mxu0
    %v346 = vpack.c.bf16 %v343, %v343
    %v347 = vld [vmem:[%s6] sm:$0xf]
    %v348 = vld [vmem:[%s6 + $0x4] sm:$0xf]
    %v349 = vld [vmem:[%s6 + $0x8] sm:$0xf]
    %v350 = vld [vmem:[%s6 + $0xc] sm:$0xf]
    %v351 = vperm.slane %v161, 0
    %v356 = vunpack.c.l.b16 %v347
    %v357 = vunpack.c.l.b16 %v348
    %v358 = vunpack.c.l.b16 %v349
    %v359 = vunpack.c.l.b16 %v350
    %v360 = vpack.c.b16 %v357, %v356
    %v361 = vpack.c.b16 %v359, %v358
    %v365 = vsel %vm134, %v346, 0
    %367 = vmatpush.bf16.msra.mxu0 0
    %368 = vmatpush.bf16.msra.mxu0 0
    %369 = vmatpush.bf16.msra.mxu0 0
    %370 = vmatpush.bf16.msra.mxu0 0
    %371 = vmatpush.bf16.msra.mxu0 0
    %372 = vmatpush.bf16.msra.mxu0 0
    %373 = vmatpush.bf16.msra.mxu0 %v361
    %374 = vmatpush.bf16.msra.mxu0 %v360
    %375 = vmatmul.bf16.gmra.mxu0 %v365
    %v376 = vpop.f32.mrf.mxu0
    %v377 = vadd.f32 %v351, %v376
    %v378 = vpop.f32.mrf.mxu0
    %379 = vdwg.mxu0
    %v380 = vadd.f32 %v156, %v377
    %v381 = vsel %vm315, %v380, 0.0
    %382 = vadd.xlane.f32.xlu0 %v381
    %v383 = vpop.xlane.xlu0 %382
    %v384 = vrcp.pop 32.0
    %v385 = vmul.f32 32.0, %v384
    %v386 = vsub.f32 1.0, %v385
    %v387 = vmul.f32 %v384, %v386
    %v388 = vadd.f32 %v384, %v387
    %vm389 = vweird.f32 %v384
    %v390 = vsel %vm389, %v384, %v388
    %v391 = vmul.f32 %v383, %v390
    %v392 = vsub.f32 %v380, %v391
    %v393 = vmul.f32 %v392, %v392
    %v394 = vsel %vm315, %v393, 0.0
    %395 = vadd.xlane.f32.xlu0 %v394
    %v396 = vpop.xlane.xlu0 %395
    %v397 = vmul.f32 %v396, %v390
    %v398 = vadd.f32 %v397, 1e-12
    %v399 = vrsqrt.pop %v398
    %v400 = vmul.f32 %v399, %v398
    %v401 = vmul.f32 %v400, %v399
    %v402 = vmul.f32 0.5, %v401
    %v403 = vsub.f32 1.5, %v402
    %v404 = vmul.f32 %v399, %v403
    %vm405 = vweird.f32 %v398
    %vm406 = vweird.f32 %v399
    %vm407 = vmor %vm405, %vm406
    %v408 = vsel %vm407, %v399, %v404
    %v409 = vmul.f32 %v392, %v408
    %v410 = vperm.slane %v164, 0
    %v411 = vmul.f32 %v409, %v410
    %v412 = vperm.slane %v165, 0
    %v413 = vadd.f32 %v411, %v412
    %v414 = vpack.c.bf16 %v413, %v413
    %v415 = vld [vmem:[%s7] sm:$0xf]
    %v416 = vld [vmem:[%s7 + $0x4] sm:$0xf]
    %v417 = vld [vmem:[%s7 + $0x8] sm:$0xf]
    %v418 = vld [vmem:[%s7 + $0xc] sm:$0xf]
    %v419 = vperm.slane %v162, 0
    %v424 = vunpack.c.l.b16 %v415
    %v425 = vunpack.c.l.b16 %v416
    %v426 = vunpack.c.l.b16 %v417
    %v427 = vunpack.c.l.b16 %v418
    %v428 = vpack.c.b16 %v425, %v424
    %v429 = vpack.c.b16 %v427, %v426
    %v433 = vsel %vm134, %v414, 0
    %435 = vmatpush.bf16.msra.mxu0 0
    %436 = vmatpush.bf16.msra.mxu0 0
    %437 = vmatpush.bf16.msra.mxu0 0
    %438 = vmatpush.bf16.msra.mxu0 0
    %439 = vmatpush.bf16.msra.mxu0 0
    %440 = vmatpush.bf16.msra.mxu0 0
    %441 = vmatpush.bf16.msra.mxu0 %v429
    %442 = vmatpush.bf16.msra.mxu0 %v428
    %443 = vmatmul.bf16.gmra.mxu0 %v433
    %v444 = vpop.f32.mrf.mxu0
    %v445 = vadd.f32 %v419, %v444
    %v446 = vpop.f32.mrf.mxu0
    %447 = vdwg.mxu0
    %v448 = vmul.f32 %v445, %v445
    %v449 = vmul.f32 %v445, %v448
    %v450 = vmul.f32 %v449, 0.044715
    %v451 = vadd.f32 %v445, %v450
    %v452 = vmul.f32 %v451, 0.7978846
    %v453 = vtanh.pop %v452
    %v454 = vadd.f32 %v453, 1.0
    %v455 = vmul.f32 %v454, 0.5
    %v456 = vmul.f32 %v445, %v455
    %v457 = vpack.c.bf16 %v456, %v456
    %v458 = vld [vmem:[%s8] sm:$0xf]
    %v459 = vld [vmem:[%s8 + $0x4] sm:$0xf]
    %v460 = vld [vmem:[%s8 + $0x8] sm:$0xf]
    %v461 = vld [vmem:[%s8 + $0xc] sm:$0xf]
    %v462 = vld [vmem:[%s8 + $0x10] sm:$0xf]
    %v463 = vld [vmem:[%s8 + $0x14] sm:$0xf]
    %v464 = vld [vmem:[%s8 + $0x18] sm:$0xf]
    %v465 = vld [vmem:[%s8 + $0x1c] sm:$0xf]
    %v466 = vperm.slane %v163, 0
    %v475 = vunpack.c.l.b16 %v458
    %v476 = vunpack.c.l.b16 %v459
    %v477 = vunpack.c.l.b16 %v460
    %v478 = vunpack.c.l.b16 %v461
    %v479 = vunpack.c.l.b16 %v462
    %v480 = vunpack.c.l.b16 %v463
    %v481 = vunpack.c.l.b16 %v464
    %v482 = vunpack.c.l.b16 %v465
    %v483 = vpack.c.b16 %v476, %v475
    %v484 = vpack.c.b16 %v478, %v477
    %v485 = vpack.c.b16 %v480, %v479
    %v486 = vpack.c.b16 %v482, %v481
    %vm491 = vcmask 523264
    %v493 = vsel %vm491, %v457, 0
    %495 = vmatpush.bf16.msra.mxu0 0
    %496 = vmatpush.bf16.msra.mxu0 0
    %497 = vmatpush.bf16.msra.mxu0 0
    %498 = vmatpush.bf16.msra.mxu0 0
    %499 = vmatpush.bf16.msra.mxu0 %v486
    %500 = vmatpush.bf16.msra.mxu0 %v485
    %501 = vmatpush.bf16.msra.mxu0 %v484
    %502 = vmatpush.bf16.msra.mxu0 %v483
    %503 = vmatmul.bf16.gmra.mxu0 %v493
    %v504 = vpop.f32.mrf.mxu0
    %v505 = vadd.f32 %v466, %v504
    %v506 = vpop.f32.mrf.mxu0
    %507 = vdwg.mxu0
    %v508 = vadd.f32 %v413, %v505
    %v509 = vsel %vm315, %v508, 0.0
    %510 = vadd.xlane.f32.xlu0 %v509
    %v511 = vpop.xlane.xlu0 %510
    %v512 = vmul.f32 %v511, %v390
    %v513 = vsub.f32 %v508, %v512
    %v514 = vmul.f32 %v513, %v513
    %v515 = vsel %vm315, %v514, 0.0
    %516 = vadd.xlane.f32.xlu0 %v515
    %v517 = vpop.xlane.xlu0 %516
    %v518 = vmul.f32 %v517, %v390
    %v519 = vadd.f32 %v518, 1e-12
    %v520 = vrsqrt.pop %v519
    %v521 = vmul.f32 %v520, %v519
    %v522 = vmul.f32 %v521, %v520
    %v523 = vmul.f32 0.5, %v522
    %v524 = vsub.f32 1.5, %v523
    %v525 = vmul.f32 %v520, %v524
    %vm526 = vweird.f32 %v519
    %vm527 = vweird.f32 %v520
    %vm528 = vmor %vm526, %vm527
    %v529 = vsel %vm528, %v520, %v525
    %v530 = vmul.f32 %v513, %v529
    %v531 = vperm.slane %v166, 0
    %v532 = vmul.f32 %v530, %v531
    %v533 = vperm.slane %v167, 0
    %v534 = vadd.f32 %v532, %v533
    %535 = vst.msk [vmem:[#allocation2] sm:$0xf] %vm315, %v534
    // Predicated region
    $region42: #{tpu_custom_call.1} parent=1 // pred_check
      _
    $region43: #{tpu_custom_call.1} parent=1 // pred_check_branch
      %537 = sbr.rel (0) target = $region45
    $region44: #{tpu_custom_call.1} parent=1 // pred_region
      %539 = vsyncadd [#allocation3], 0
      %s541 = sshll.u32 [#allocation2], 4
      %s542 = int_to_ptr.vmem [resolvable:$true] %s541
      %s543 = sshll.u32 %s10, 4
      %s544 = int_to_ptr.hbm [resolvable:$true] %s543
      %546 = dma.vmem_to_hbm [thread:$0]  %s542, 64, %s544, [#allocation3]
    $region45: #{tpu_custom_call.1} parent=1 // pred_fallthru
      _
    // Predicated region
    $region46: #{tpu_custom_call.1} parent=1 // pred_check
      _
    $region47: #{tpu_custom_call.1} parent=1 // pred_check_branch
      %548 = sbr.rel (0) target = $region49
    $region48: #{tpu_custom_call.1} parent=1 // pred_region
      %550 = dma.done [#allocation3], 64
    $region49: #{tpu_custom_call.1} parent=1 // pred_fallthru
      _
    %551 = vsyncpa [#allocation3], 1

</llo_original>
